<compile_context>
chip_gen: v7x
topology: tpu7x:2x2x1
jax: 0.10.0
libtpu: 0.0.40
codegen_flags: <defaults>
</compile_context>

<pallas_src>
import numpy as np
import jax
import jax.numpy as jnp
from jax.experimental import pallas as pl
from jax.experimental.pallas import tpu as pltpu


_LANES = 512                      # slab width; multiple of 128 lanes
_BLOCKS_PER_ROW = _LANES // 64    # 8 flattened 8x8 blocks per slab row
_MAX_ROW_TILE = 2048              # 2048 x 512 x 4B = 4 MiB per block buffer
_SMALL_ROWS = 16                  # below this, never split the grid


def make_c_table() -> np.ndarray:
    """Deterministic JPEG chrominance quantization table (same as utils.c_table)."""
    c_table = np.empty((8, 8), dtype=np.float32)
    c_table.fill(99.0)
    c_table[:4, :4] = np.array(
        [[17, 18, 24, 47],
         [18, 21, 26, 66],
         [24, 26, 56, 99],
         [47, 66, 99, 99]], dtype=np.float32).T
    return c_table


def _num_tensorcores() -> int:
    """Best-effort detection of TensorCores per chip for grid splitting."""
    try:
        kind = jax.devices()[0].device_kind.lower()
    except Exception:
        return 1
    # Single-TC chips: v2/v3 (per-core devices), v5e ("v5 lite"), v6e.
    if "lite" in kind or "v5e" in kind or "v6e" in kind or "v6" in kind:
        return 1
    # Megacore / dual-TensorCore chips: v4, v5p, v7x.
    if "v4" in kind or "v5p" in kind or "7" in kind:
        return 2
    return 1


def _select_row_tile(rows: int, num_tc: int) -> int:
    """Pick the row-tile size (multiple of 8, or == rows when rows is small)."""
    if num_tc <= 1 or rows < _SMALL_ROWS:
        # Sequential grid: one big tile when it fits (per-step overhead ~0.35us).
        return min(rows, _MAX_ROW_TILE)
    # Multi-TC: split the "parallel" axis into an even number of steps so both
    # TensorCores get equal work; keep the tile a multiple of 8 (sublane rule).
    steps = max(num_tc, pl.cdiv(rows, _MAX_ROW_TILE))
    steps = pl.cdiv(steps, num_tc) * num_tc
    tr = pl.cdiv(pl.cdiv(rows, steps), 8) * 8
    return min(tr, _MAX_ROW_TILE)


def _dequant_kernel(x_ref, t_ref, o_ref):
    # x_ref: (tr, 512), t_ref: (1, 512), o_ref: (tr, 512)
    # Single streaming VPU multiply; the table row broadcasts along sublanes.
    o_ref[...] = x_ref[...] * t_ref[...]


def c_dequantize(image: jnp.ndarray, factor: float = 1.0) -> jnp.ndarray:
    """Pallas TPU implementation of c_dequantize.forward.

    image: (B, 8, 8) float32
    returns: (B, 8, 8) float32
    """
    assert image.ndim == 3 and image.shape[1:] == (8, 8), image.shape
    B = image.shape[0]
    dtype = image.dtype

    # Fold `factor` into the table once at trace time and replicate it to one
    # lane-dense row.  NOTE: `factor` is baked at trace time (matches the
    # nn.Module ctor arg); pass it via SMEM scalar if it must vary without
    # recompiling.
    scaled = (make_c_table() * np.float32(factor)).reshape(1, 64)
    table_row = jnp.asarray(np.tile(scaled, (1, _BLOCKS_PER_ROW)), dtype=dtype)  # (1, 512)

    # ---- lane-dense slab layout -------------------------------------------
    # Pad only to a whole slab row (B multiple of 8 blocks) so the (rows, 512)
    # reshape is legal; never pad rows up to the tile size.
    b_pad = pl.cdiv(B, _BLOCKS_PER_ROW) * _BLOCKS_PER_ROW
    rows = b_pad // _BLOCKS_PER_ROW

    flat = image.reshape(B, 64)
    if b_pad != B:
        flat = jnp.pad(flat, ((0, b_pad - B), (0, 0)))
    slab = flat.reshape(rows, _LANES)

    num_tc = _num_tensorcores()
    tr = _select_row_tile(rows, num_tc)
    grid = (pl.cdiv(rows, tr),)   # partial last tile is masked by Pallas

    out_slab = pl.pallas_call(
        _dequant_kernel,
        out_shape=jax.ShapeDtypeStruct((rows, _LANES), dtype),
        grid_spec=pltpu.PrefetchScalarGridSpec(
            num_scalar_prefetch=0,
            grid=grid,
            in_specs=[
                pl.BlockSpec((tr, _LANES), lambda i: (i, 0)),
                pl.BlockSpec((1, _LANES), lambda i: (0, 0)),   # resident table row
            ],
            out_specs=pl.BlockSpec((tr, _LANES), lambda i: (i, 0)),
        ),
        compiler_params=pltpu.CompilerParams(
            dimension_semantics=("parallel",),
            # 4 MiB x (in + out) x double buffering ~= 16 MiB; 32 MiB leaves
            # headroom and stays well under v7x's 64 MiB physical VMEM.
            vmem_limit_bytes=32 * 1024 * 1024,
        ),
        cost_estimate=pl.CostEstimate(
            flops=rows * _LANES,
            transcendentals=0,
            bytes_accessed=2 * rows * _LANES * 4 + _LANES * 4,
        ),
    )(slab, table_row)

    if b_pad != B:
        return out_slab.reshape(b_pad, 64)[:B].reshape(B, 8, 8)
    return out_slab.reshape(B, 8, 8)


if __name__ == "__main__":
    key = jax.random.PRNGKey(0)
    B = 12          # exercises the B % 8 != 0 path (pads to 2 slab rows)
    factor = 2.0
    # Quantized DCT coefficients are small integers; use random ints cast to f32.
    image = jax.random.randint(key, (B, 8, 8), -16, 16).astype(jnp.float32)

    out = c_dequantize(image, factor=factor)
    out = jax.block_until_ready(out)

    # Reference check against plain numpy.
    ref = np.asarray(image) * (make_c_table() * np.float32(factor))
    np.testing.assert_allclose(np.asarray(out), ref, rtol=1e-6, atol=1e-6)

    print("KERNEL_OK")
</pallas_src>

<mosaic_0001>
module attributes {stable_mosaic.version = 11 : i64} {
  func.func @_dequant_kernel(%arg0: i32, %arg1: memref<2x512xf32, #tpu.memory_space<vmem>>, %arg2: memref<1x512xf32, #tpu.memory_space<vmem>>, %arg3: memref<2x512xf32, #tpu.memory_space<vmem>>) attributes {dimension_semantics = [#tpu.dimension_semantics<parallel>], iteration_bounds = array<i64: 1>, scalar_prefetch = 0 : i64, scratch_operands = 0 : i64, tpu.core_type = #tpu.core_type<tc>, window_params = [{transform_indices = @transform_0, window_bounds = array<i64: 2, 512>}, {pipeline_mode = #tpu.pipeline_mode<synchronous>, transform_indices = @transform_1, window_bounds = array<i64: 1, 512>}, {transform_indices = @transform_2, window_bounds = array<i64: 2, 512>}]} {
    %c0 = arith.constant 0 : index
    %c0_0 = arith.constant 0 : index
    %0 = vector.load %arg1[%c0, %c0_0] : memref<2x512xf32, #tpu.memory_space<vmem>>, vector<2x512xf32>
    %c0_1 = arith.constant 0 : index
    %c0_2 = arith.constant 0 : index
    %1 = vector.load %arg2[%c0_1, %c0_2] : memref<1x512xf32, #tpu.memory_space<vmem>>, vector<1x512xf32>
    %2 = vector.broadcast %1 : vector<1x512xf32> to vector<2x512xf32>
    %3 = arith.mulf %0, %2 : vector<2x512xf32>
    %c0_3 = arith.constant 0 : index
    %c0_4 = arith.constant 0 : index
    %4 = vector.load %arg3[%c0_3, %c0_4] : memref<2x512xf32, #tpu.memory_space<vmem>>, vector<2x512xf32>
    tpu.vector_store %arg3[%c0_3, %c0_4], %3 {strides = array<i32>} : memref<2x512xf32, #tpu.memory_space<vmem>>, vector<2x512xf32>,
    return
  }
  func.func @transform_0(%arg0: i32) -> (i32, i32) {
    %c0_i32 = arith.constant 0 : i32
    %c0_i32_0 = arith.constant 0 : i32
    return %arg0, %c0_i32 : i32, i32
  }
  func.func @transform_1(%arg0: i32) -> (i32, i32) {
    %c0_i32 = arith.constant 0 : i32
    %c0_i32_0 = arith.constant 0 : i32
    %c0_i32_1 = arith.constant 0 : i32
    return %c0_i32, %c0_i32_0 : i32, i32
  }
  func.func @transform_2(%arg0: i32) -> (i32, i32) {
    %c0_i32 = arith.constant 0 : i32
    %c0_i32_0 = arith.constant 0 : i32
    return %arg0, %c0_i32 : i32, i32
  }
}

</mosaic_0001>

<llo_original>
// kernel: tpu_custom_call.1
$region0: #{tpu_custom_call.1}
  #allocation0 [shape = 'u32[]', space=smem, size = 0x4, offset = 0x4, fixed_abs, tag = 'smem constant byte address 0x4 - core index']
  #allocation1 [shape = 'u32[144,128]{1,0:T(1,128)}', space=vmem, size = 0x12000, scoped, tag = 'internal scratch']
  %s0 = inlined_call_operand.hbm [shape: f32[2,512], index: 0, kind: input, shape index: {}]
  %s1 = inlined_call_operand.hbm [shape: f32[1,512], index: 1, kind: input, shape index: {}]
  %s2 = inlined_call_operand.hbm [shape: f32[2,512], index: 2, kind: output, shape index: {}]
  %s3 = sld [smem:[#allocation0]]
  $region26: #{tpu_custom_call.1} parent=0
    _
  %s5 = ssub.s32 1, %s3
  %s6 = scalar_select 0, %s5, %s3
  $region1: #{tpu_custom_call.1} parent=0
    #allocation2 [shape = 'u8[4096]{0}', space=vmem, size = 0x1000, scoped, tag = 'input window, operand 0, single buffered']
    #allocation3 [shape = 's32[1]{0}', space=sflag, size = 0x4, scoped, tag = 'scoped memory for tpu_custom_call.1']
    #allocation4 [shape = 's32[1]{0}', space=sflag, size = 0x4, scoped, tag = 'scoped memory for tpu_custom_call.1']
    #allocation5 [shape = 'u8[2048]{0}', space=vmem, size = 0x800, scoped, tag = 'input window, operand 1, single buffered']
    #allocation6 [shape = 's32[1]{0}', space=sflag, size = 0x4, scoped, tag = 'scoped memory for tpu_custom_call.1']
    #allocation7 [shape = 'u8[4096]{0}', space=vmem, size = 0x1000, scoped, tag = 'output window, operand 0, single buffered']
    %7 = vsyncpa [#allocation3], 0
    %8 = vsyncpa [#allocation6], 0
    %9 = vsyncpa [#allocation4], 0
    // Predicated region
    $region2: #{tpu_custom_call.1} parent=1 // pred_check
      _
    $region3: #{tpu_custom_call.1} parent=1 // pred_check_branch
      %11 = sbr.rel (0) target = $region5
    $region4: #{tpu_custom_call.1} parent=1 // pred_region
      %s13 = ssub.s32 128, 128
      %14 = vsyncadd [#allocation3], %s13
      %s16 = sshll.u32 [#allocation2], 4
      %s17 = int_to_ptr.vmem [resolvable:$true] %s16
      %19 = dma.hbm_to_vmem [thread:$0]  %s0, 128, %s17, [#allocation3]
    $region5: #{tpu_custom_call.1} parent=1 // pred_fallthru
      _
    // Predicated region
    $region6: #{tpu_custom_call.1} parent=1 // pred_check
      _
    $region7: #{tpu_custom_call.1} parent=1 // pred_check_branch
      %21 = sbr.rel (0) target = $region9
    $region8: #{tpu_custom_call.1} parent=1 // pred_region
      %s23 = ssub.s32 64, 64
      %24 = vsyncadd [#allocation6], %s23
      %s26 = sshll.u32 [#allocation5], 4
      %s27 = int_to_ptr.vmem [resolvable:$true] %s26
      %29 = dma.hbm_to_vmem [thread:$0]  %s1, 64, %s27, [#allocation6]
    $region9: #{tpu_custom_call.1} parent=1 // pred_fallthru
      _
    // Predicated region
    $region10: #{tpu_custom_call.1} parent=1 // pred_check
      _
    $region11: #{tpu_custom_call.1} parent=1 // pred_check_branch
      %31 = sbr.rel (0) target = $region13
    $region12: #{tpu_custom_call.1} parent=1 // pred_region
      %32 = dma.done [#allocation3], 128
    $region13: #{tpu_custom_call.1} parent=1 // pred_fallthru
      _
    // Predicated region
    $region14: #{tpu_custom_call.1} parent=1 // pred_check
      _
    $region15: #{tpu_custom_call.1} parent=1 // pred_check_branch
      %34 = sbr.rel (0) target = $region17
    $region16: #{tpu_custom_call.1} parent=1 // pred_region
      %35 = dma.done [#allocation6], 64
    $region17: #{tpu_custom_call.1} parent=1 // pred_fallthru
      _
    %v36 = vld [vmem:[#allocation2] sm:$0xff]
    %v37 = vld [vmem:[#allocation5] sm:$0xf]
    %v39 = vlaneseq
    %v40 = vshrl.u32 %v39, 7
    %v41 = vsub.s32 0, %v40
    %v42 = vrot.slane %v37, %v41
    %v43 = vlaneseq
    %v44 = vshrl.u32 %v43, 7
    %v45 = vsub.s32 1, %v44
    %v46 = vrot.slane %v37, %v45
    %v47 = vlaneseq
    %v48 = vshrl.u32 %v47, 7
    %v49 = vsub.s32 2, %v48
    %v50 = vrot.slane %v37, %v49
    %v51 = vlaneseq
    %v52 = vshrl.u32 %v51, 7
    %v53 = vsub.s32 3, %v52
    %v54 = vrot.slane %v37, %v53
    %v55 = vcombine.low %v42, %v46
    %v56 = vcombine.low %v50, %v54
    %v58 = vunpack.c.l.s4 1983009808
    %v59 = vunpack.c.0.s8 %v58
    %v60 = vlaneseq
    %v61 = vshrl.u32 %v60, 7
    %v62 = vsub.s32 %v59, %v61
    %v63 = vrot.slane %v55, %v62
    %v65 = vunpack.c.l.s4 1983009808
    %v66 = vunpack.c.0.s8 %v65
    %v67 = vlaneseq
    %v68 = vshrl.u32 %v67, 7
    %v69 = vsub.s32 %v66, %v68
    %v70 = vrot.slane %v56, %v69
    %v71 = vcombine.low %v63, %v70
    %v73 = vmul.f32 %v36, %v71
    %74 = vst [vmem:[#allocation7] sm:$0xff] %v73
    // Predicated region
    $region18: #{tpu_custom_call.1} parent=1 // pred_check
      _
    $region19: #{tpu_custom_call.1} parent=1 // pred_check_branch
      %76 = sbr.rel (0) target = $region21
    $region20: #{tpu_custom_call.1} parent=1 // pred_region
      %s78 = ssub.s32 128, 128
      %79 = vsyncadd [#allocation4], %s78
      %s81 = sshll.u32 [#allocation7], 4
      %s82 = int_to_ptr.vmem [resolvable:$true] %s81
      %84 = dma.vmem_to_hbm [thread:$0]  %s82, 128, %s2, [#allocation4]
    $region21: #{tpu_custom_call.1} parent=1 // pred_fallthru
      _
    // Predicated region
    $region22: #{tpu_custom_call.1} parent=1 // pred_check
      _
    $region23: #{tpu_custom_call.1} parent=1 // pred_check_branch
      %86 = sbr.rel (0) target = $region25
    $region24: #{tpu_custom_call.1} parent=1 // pred_region
      %87 = dma.done [#allocation4], 128
    $region25: #{tpu_custom_call.1} parent=1 // pred_fallthru
      _
    %88 = vsyncpa [#allocation3], 1
    %89 = vsyncpa [#allocation6], 1
    %90 = vsyncpa [#allocation4], 1

</llo_original>
